<compile_context>
chip_gen: v7x
topology: tpu7x:2x2x1
jax: 0.10.0
libtpu: 0.0.40
codegen_flags: <defaults>
</compile_context>

<pallas_src>
import numpy as np
import jax
import jax.numpy as jnp
from jax.experimental import pallas as pl
from jax.experimental.pallas import tpu as pltpu

try:  # prefer scipy's O(n^3) solver when available; fall back to pure numpy.
    from scipy.optimize import linear_sum_assignment as _scipy_lsa
except Exception:  # pragma: no cover
    _scipy_lsa = None


_SELF_KEY_CHUNK = 512  # key-axis tile for the streaming self-similarity LSE


# ----------------------------------------------------------------------------
# Generation-aware tiling helpers.
# ----------------------------------------------------------------------------
def _vmem_capacity_bytes():
    """Physical VMEM of the local chip (128 MiB v5e/v6e, 64 MiB per-TC v7x)."""
    try:
        return int(pltpu.get_tpu_info().vmem_capacity_bytes)
    except Exception:  # pragma: no cover - conservative fallback (v7x sized)
        return 64 * 1024 * 1024


def _per_batch_vmem_bytes(n, m, d):
    """Rough per-batch VMEM footprint of the fused kernel, incl. temporaries."""
    kc = min(n, _SELF_KEY_CHUNK)
    b = 4 * (n * d + m * d)        # f32 input blocks
    b += 4 * (n * m + n)           # cos + lse output blocks
    b += 4 * (n * d + m * d)       # normalized f32 temporaries
    b += 2 * (n * d + m * d)       # bf16 MXU operand copies
    b += 4 * n * m                 # exp(cos - m) temporary
    b += 4 * 3 * n * kc            # self-sim chunk + exp temporaries
    return b


def _pick_tb(batch, per_batch_bytes, vmem_budget, max_tb=64):
    """Largest batch tile that divides `batch`, fits the generation-aware VMEM
    budget when double-buffered, and keeps enough grid steps for pipelining:
    >= 4 even steps when batch allows it (v7x shards the 'parallel' axis over
    2 TensorCores, each core needs >= 2 steps to overlap DMA with compute)."""
    best = 1
    for tb in range(1, min(batch, max_tb) + 1):
        if batch % tb:
            continue
        g = batch // tb
        if batch >= 8 and (g < 4 or g % 2):
            continue
        if 2 <= batch < 8 and g < 2:
            continue
        if 2 * tb * per_batch_bytes > vmem_budget:
            continue
        best = tb
    return best


def _compiler_params(block_bytes, vmem_cap):
    """Parallel batch axis; raise the scoped-VMEM limit only when the batched
    blocks would exceed the smallest default (16 MiB on v5e), capped at ~65%
    of the chip's physical VMEM (so ~41 MiB on v7x, ~83 MiB on v5e/v6e)."""
    kwargs = dict(dimension_semantics=("parallel",))
    est = 3 * block_bytes  # double-buffered blocks + temporaries headroom
    if est > 16 * 1024 * 1024:
        kwargs["vmem_limit_bytes"] = int(min(max(est, 32 * 1024 * 1024),
                                             int(0.65 * vmem_cap)))
    return pltpu.CompilerParams(**kwargs)


# ----------------------------------------------------------------------------
# Fused kernel: L2 normalize, cross cosine matrix, and per-row logsumexp of
# cat((cos, self_sim_no_diag), -1) using an online (key-chunked) softmax.
# ----------------------------------------------------------------------------
def _fused_kernel(x_ref, t_ref, cos_ref, lse_ref):
    x = x_ref[...].astype(jnp.float32)                       # (TB, N, D)
    t = t_ref[...].astype(jnp.float32)                       # (TB, M, D)
    # F.normalize(dim=-1, p=2, eps=1e-12): x / max(||x||, 1e-12), done in f32.
    xn = x * jax.lax.rsqrt(jnp.maximum(jnp.sum(x * x, -1, keepdims=True), 1e-24))
    tn = t * jax.lax.rsqrt(jnp.maximum(jnp.sum(t * t, -1, keepdims=True), 1e-24))
    # bf16 operands for the MXU, f32 accumulation.
    xb = xn.astype(jnp.bfloat16)
    tb = tn.astype(jnp.bfloat16)

    # Cross cosine matrix (contracting the last dims: no XLU transpose).
    cos = jnp.einsum("bnd,bmd->bnm", xb, tb,
                     preferred_element_type=jnp.float32)     # (TB, N, M)
    # TODO(synk): when M < 128 this store is lane-masked; emit a lane-dense
    # flattened slab instead once the required in-kernel relayout (merge of the
    # two tiled minor dims) is verified on the target Mosaic version.
    cos_ref[...] = cos

    # Stage 1 of the online logsumexp: the cos block.
    m_run = jnp.max(cos, axis=-1, keepdims=True)             # (TB, N, 1)
    s_run = jnp.sum(jnp.exp(cos - m_run), axis=-1, keepdims=True)

    # Stage 2: stream the self-similarity block over the key axis so the
    # (TB, N, N) matrix (plus exp temporaries) is never fully materialized.
    _, n, _ = cos.shape
    kc_full = min(n, _SELF_KEY_CHUNK)
    for start in range(0, n, kc_full):
        kc = min(kc_full, n - start)
        keys = jax.lax.slice_in_dim(xb, start, start + kc, axis=1)  # (TB, kc, D)
        sm = jnp.einsum("bnd,bkd->bnk", xb, keys,
                        preferred_element_type=jnp.float32)         # (TB, N, kc)
        # Mask the diagonal (row n vs global key start+k); small (1, N, kc)
        # iotas broadcast over TB — equivalent to dropping the diagonal column.
        r = jax.lax.broadcasted_iota(jnp.int32, (1, n, kc), 1)
        c = jax.lax.broadcasted_iota(jnp.int32, (1, n, kc), 2) + start
        sm = jnp.where(r == c, jnp.float32(-1e30), sm)
        m_new = jnp.maximum(m_run, jnp.max(sm, axis=-1, keepdims=True))
        s_run = (s_run * jnp.exp(m_run - m_new)
                 + jnp.sum(jnp.exp(sm - m_new), axis=-1, keepdims=True))
        m_run = m_new

    lse_ref[0] = m_run[..., 0] + jnp.log(s_run[..., 0])      # (TB, N)


def fused_cosine_lse(inputs, targets, tb):
    B, N, D = inputs.shape
    M = targets.shape[1]
    G = B // tb
    vmem_cap = _vmem_capacity_bytes()
    block_bytes = tb * _per_batch_vmem_bytes(N, M, D)
    cos, lse = pl.pallas_call(
        _fused_kernel,
        out_shape=(jax.ShapeDtypeStruct((B, N, M), jnp.float32),
                   jax.ShapeDtypeStruct((G, tb, N), jnp.float32)),
        grid=(G,),
        in_specs=[pl.BlockSpec((tb, N, D), lambda b: (b, 0, 0)),
                  pl.BlockSpec((tb, M, D), lambda b: (b, 0, 0))],
        out_specs=(pl.BlockSpec((tb, N, M), lambda b: (b, 0, 0)),
                   pl.BlockSpec((1, tb, N), lambda b: (b, 0, 0))),
        compiler_params=_compiler_params(block_bytes, vmem_cap),
    )(inputs, targets)
    return cos, lse.reshape(B, N)


# ----------------------------------------------------------------------------
# Host-side Hungarian (O(n^3) Jonker-Volgenant; scipy if available).
# ----------------------------------------------------------------------------
def _jv_assignment(cost):
    cost = np.asarray(cost, dtype=np.float64)
    n, m = cost.shape
    assert n == m, "square cost matrix expected"
    u = np.zeros(n + 1)
    v = np.zeros(m + 1)
    p = np.zeros(m + 1, dtype=np.int64)     # p[j] = row (1-based) matched to col j
    way = np.zeros(m + 1, dtype=np.int64)
    for i in range(1, n + 1):
        p[0] = i
        j0 = 0
        minv = np.full(m + 1, np.inf)
        used = np.zeros(m + 1, dtype=bool)
        while True:
            used[j0] = True
            i0 = p[j0]
            delta = np.inf
            j1 = -1
            for j in range(1, m + 1):
                if not used[j]:
                    cur = cost[i0 - 1, j - 1] - u[i0] - v[j]
                    if cur < minv[j]:
                        minv[j] = cur
                        way[j] = j0
                    if minv[j] < delta:
                        delta = minv[j]
                        j1 = j
            for j in range(m + 1):
                if used[j]:
                    u[p[j]] += delta
                    v[j] -= delta
                else:
                    minv[j] -= delta
            j0 = j1
            if p[j0] == 0:
                break
        while True:
            j1 = way[j0]
            p[j0] = p[j1]
            j0 = j1
            if j0 == 0:
                break
    col_of_row = np.zeros(n, dtype=np.int32)
    for j in range(1, m + 1):
        if p[j] > 0:
            col_of_row[p[j] - 1] = j - 1
    return col_of_row


def _min_cost_assignment(cost):
    if _scipy_lsa is not None:
        rows, cols = _scipy_lsa(cost)
        out = np.empty(cost.shape[0], dtype=np.int32)
        out[rows] = cols.astype(np.int32)
        return out
    return _jv_assignment(cost)


# ----------------------------------------------------------------------------
# Forward pass.
# ----------------------------------------------------------------------------
def hungarian_loss(inputs, targets):
    B, N, D = inputs.shape
    M = targets.shape[1]
    vmem_cap = _vmem_capacity_bytes()
    per_batch = _per_batch_vmem_bytes(N, M, D)
    tb = _pick_tb(B, per_batch, vmem_budget=int(0.35 * vmem_cap))

    # Single fused device pass: cos (for the host Hungarian) + per-row lse.
    cos_mat, lse = fused_cosine_lse(inputs, targets, tb)     # (B,N,M), (B,N)

    # TODO(synk): for large B, chunk the batch and overlap device_get / the
    # host Hungarian of chunk i with the device kernel of chunk i+1 (and ship
    # cos as bf16) to hide the D2H round trip behind device work.
    cos_np = np.asarray(jax.device_get(cos_mat))
    assign = np.stack([_min_cost_assignment(-cos_np[b]) for b in range(B)])
    assign = assign.astype(np.int32)                          # (B, N)
    assign_dev = jnp.asarray(assign)

    # Target logit always lives in the cos block: a plain-XLA gather suffices.
    picked = jnp.take_along_axis(cos_mat, assign_dev[..., None], axis=-1)[..., 0]
    # Every batch contributes exactly N equally-weighted rows, so the global
    # row mean equals (1/B) * sum_b mean_over_rows_b (the reference reduction).
    loss = jnp.mean(lse - picked)
    return loss, assign_dev


# ----------------------------------------------------------------------------
# Pure-JAX reference (mirrors the PyTorch forward, using the same assignment).
# ----------------------------------------------------------------------------
def reference_loss(inputs, targets, assign):
    B, N, D = inputs.shape
    xn = inputs / jnp.maximum(jnp.linalg.norm(inputs, axis=-1, keepdims=True), 1e-12)
    tn = targets / jnp.maximum(jnp.linalg.norm(targets, axis=-1, keepdims=True), 1e-12)
    total = 0.0
    for b in range(B):
        cos = jnp.einsum("ad,bd->ab", xn[b], tn[b],
                         precision=jax.lax.Precision.HIGHEST)
        sm = jnp.einsum("ad,bd->ab", xn[b], xn[b],
                        precision=jax.lax.Precision.HIGHEST)
        nodiag = jnp.tril(sm, -1)[:, :-1] + jnp.triu(sm, 1)[:, 1:]
        logits = jnp.concatenate([cos, nodiag], axis=-1)
        tg = assign[b]
        lse = jax.scipy.special.logsumexp(logits, axis=-1)
        picked = logits[jnp.arange(N), tg]
        total = total + jnp.mean(lse - picked)
    return total / B


if __name__ == "__main__":
    key = jax.random.PRNGKey(0)
    k1, k2 = jax.random.split(key)
    B, N, D = 2, 8, 32
    inputs = jax.random.normal(k1, (B, N, D), dtype=jnp.float32)
    targets = jax.random.normal(k2, (B, N, D), dtype=jnp.float32)

    loss, assign = hungarian_loss(inputs, targets)
    loss = jax.block_until_ready(loss)

    ref = reference_loss(inputs, targets, assign)
    # bf16 MXU operands (f32 accumulate) in the kernel => allow ~2e-2 slack.
    assert abs(float(loss) - float(ref)) < 2e-2, (float(loss), float(ref))
    print("KERNEL_OK")
</pallas_src>

<mosaic_0001>
module attributes {stable_mosaic.version = 11 : i64} {
  func.func @_fused_kernel(%arg0: i32, %arg1: memref<1x8x32xf32, #tpu.memory_space<vmem>>, %arg2: memref<1x8x32xf32, #tpu.memory_space<vmem>>, %arg3: memref<1x8x8xf32, #tpu.memory_space<vmem>>, %arg4: memref<1x1x8xf32, #tpu.memory_space<vmem>>) attributes {dimension_semantics = [#tpu.dimension_semantics<parallel>], iteration_bounds = array<i64: 2>, scalar_prefetch = 0 : i64, scratch_operands = 0 : i64, tpu.core_type = #tpu.core_type<tc>, window_params = [{transform_indices = @transform_0, window_bounds = array<i64: 1, 8, 32>}, {transform_indices = @transform_1, window_bounds = array<i64: 1, 8, 32>}, {transform_indices = @transform_2, window_bounds = array<i64: 1, 8, 8>}, {transform_indices = @transform_3, window_bounds = array<i64: 1, 1, 8>}]} {
    %c0 = arith.constant 0 : index
    %c0_0 = arith.constant 0 : index
    %c0_1 = arith.constant 0 : index
    %0 = vector.load %arg1[%c0, %c0_0, %c0_1] : memref<1x8x32xf32, #tpu.memory_space<vmem>>, vector<1x8x32xf32>
    %c0_2 = arith.constant 0 : index
    %c0_3 = arith.constant 0 : index
    %c0_4 = arith.constant 0 : index
    %1 = vector.load %arg2[%c0_2, %c0_3, %c0_4] : memref<1x8x32xf32, #tpu.memory_space<vmem>>, vector<1x8x32xf32>
    %2 = arith.mulf %0, %0 : vector<1x8x32xf32>
    %cst = arith.constant dense<0.000000e+00> : vector<1x8xf32>
    %3 = vector.multi_reduction <add>, %2, %cst [2] : vector<1x8x32xf32> to vector<1x8xf32>
    %4 = vector.shape_cast %3 : vector<1x8xf32> to vector<1x8x1xf32>
    %cst_5 = arith.constant 1.000000e-24 : f32
    %5 = vector.broadcast %cst_5 : f32 to vector<1x8x1xf32>
    %6 = arith.maximumf %4, %5 : vector<1x8x1xf32>
    %7 = math.rsqrt %6 : vector<1x8x1xf32>
    %8 = vector.broadcast %7 : vector<1x8x1xf32> to vector<1x8x32xf32>
    %9 = arith.mulf %0, %8 : vector<1x8x32xf32>
    %10 = arith.mulf %1, %1 : vector<1x8x32xf32>
    %cst_6 = arith.constant dense<0.000000e+00> : vector<1x8xf32>
    %11 = vector.multi_reduction <add>, %10, %cst_6 [2] : vector<1x8x32xf32> to vector<1x8xf32>
    %12 = vector.shape_cast %11 : vector<1x8xf32> to vector<1x8x1xf32>
    %cst_7 = arith.constant 1.000000e-24 : f32
    %13 = vector.broadcast %cst_7 : f32 to vector<1x8x1xf32>
    %14 = arith.maximumf %12, %13 : vector<1x8x1xf32>
    %15 = math.rsqrt %14 : vector<1x8x1xf32>
    %16 = vector.broadcast %15 : vector<1x8x1xf32> to vector<1x8x32xf32>
    %17 = arith.mulf %1, %16 : vector<1x8x32xf32>
    %18 = arith.truncf %9 : vector<1x8x32xf32> to vector<1x8x32xbf16>
    %19 = arith.truncf %17 : vector<1x8x32xf32> to vector<1x8x32xbf16>
    "tpu.trace_start"() <{level = 10 : i32, message = "bnd,bmd->bnm"}> : () -> ()
    %cst_8 = arith.constant dense<0.000000e+00> : vector<1x8x8xf32>
    %20 = tpu.matmul %18, %19, %cst_8 {dimension_numbers = #tpu.dot_dimension_numbers<[2], [2], [1], [1], [0, 0, 0, 1, 1, 1], [0], [0]>} : vector<1x8x32xbf16>, vector<1x8x32xbf16>, vector<1x8x8xf32> -> vector<1x8x8xf32>
    "tpu.trace_stop"() : () -> ()
    %c0_9 = arith.constant 0 : index
    %c0_10 = arith.constant 0 : index
    %c0_11 = arith.constant 0 : index
    %21 = vector.load %arg3[%c0_9, %c0_10, %c0_11] : memref<1x8x8xf32, #tpu.memory_space<vmem>>, vector<1x8x8xf32>
    tpu.vector_store %arg3[%c0_9, %c0_10, %c0_11], %20 {strides = array<i32>} : memref<1x8x8xf32, #tpu.memory_space<vmem>>, vector<1x8x8xf32>,
    %cst_12 = arith.constant dense<0xFF800000> : vector<1x8xf32>
    %22 = vector.multi_reduction <maximumf>, %20, %cst_12 [2] : vector<1x8x8xf32> to vector<1x8xf32>
    %23 = vector.shape_cast %22 : vector<1x8xf32> to vector<1x8x1xf32>
    %24 = vector.broadcast %23 : vector<1x8x1xf32> to vector<1x8x8xf32>
    %25 = arith.subf %20, %24 : vector<1x8x8xf32>
    %26 = math.exp %25 : vector<1x8x8xf32>
    %cst_13 = arith.constant dense<0.000000e+00> : vector<1x8xf32>
    %27 = vector.multi_reduction <add>, %26, %cst_13 [2] : vector<1x8x8xf32> to vector<1x8xf32>
    %28 = vector.shape_cast %27 : vector<1x8xf32> to vector<1x8x1xf32>
    %29 = vector.extract_strided_slice %18 {offsets = [0, 0, 0], sizes = [1, 8, 32], strides = [1, 1, 1]} : vector<1x8x32xbf16> to vector<1x8x32xbf16>
    "tpu.trace_start"() <{level = 10 : i32, message = "bnd,bkd->bnk"}> : () -> ()
    %cst_14 = arith.constant dense<0.000000e+00> : vector<1x8x8xf32>
    %30 = tpu.matmul %18, %29, %cst_14 {dimension_numbers = #tpu.dot_dimension_numbers<[2], [2], [1], [1], [0, 0, 0, 1, 1, 1], [0], [0]>} : vector<1x8x32xbf16>, vector<1x8x32xbf16>, vector<1x8x8xf32> -> vector<1x8x8xf32>
    "tpu.trace_stop"() : () -> ()
    %31 = tpu.iota {dimensions = array<i32: 1>} : vector<1x8x8xi32>
    %32 = tpu.iota {dimensions = array<i32: 2>} : vector<1x8x8xi32>
    %c0_i32 = arith.constant 0 : i32
    %33 = vector.broadcast %c0_i32 : i32 to vector<1x8x8xi32>
    %34 = arith.addi %32, %33 : vector<1x8x8xi32>
    %35 = arith.cmpi eq, %31, %34 : vector<1x8x8xi32>
    %cst_15 = arith.constant -1.000000e+30 : f32
    %36 = vector.broadcast %cst_15 : f32 to vector<1x8x8xf32>
    %37 = arith.select %35, %36, %30 : vector<1x8x8xi1>, vector<1x8x8xf32>
    %cst_16 = arith.constant dense<0xFF800000> : vector<1x8xf32>
    %38 = vector.multi_reduction <maximumf>, %37, %cst_16 [2] : vector<1x8x8xf32> to vector<1x8xf32>
    %39 = vector.shape_cast %38 : vector<1x8xf32> to vector<1x8x1xf32>
    %40 = arith.maximumf %23, %39 : vector<1x8x1xf32>
    %41 = arith.subf %23, %40 : vector<1x8x1xf32>
    %42 = math.exp %41 : vector<1x8x1xf32>
    %43 = arith.mulf %28, %42 : vector<1x8x1xf32>
    %44 = vector.broadcast %40 : vector<1x8x1xf32> to vector<1x8x8xf32>
    %45 = arith.subf %37, %44 : vector<1x8x8xf32>
    %46 = math.exp %45 : vector<1x8x8xf32>
    %cst_17 = arith.constant dense<0.000000e+00> : vector<1x8xf32>
    %47 = vector.multi_reduction <add>, %46, %cst_17 [2] : vector<1x8x8xf32> to vector<1x8xf32>
    %48 = vector.shape_cast %47 : vector<1x8xf32> to vector<1x8x1xf32>
    %49 = arith.addf %43, %48 : vector<1x8x1xf32>
    %50 = vector.shape_cast %40 : vector<1x8x1xf32> to vector<1x8xf32>
    %51 = vector.shape_cast %49 : vector<1x8x1xf32> to vector<1x8xf32>
    %52 = math.log %51 : vector<1x8xf32>
    %53 = arith.addf %50, %52 : vector<1x8xf32>
    %c0_18 = arith.constant 0 : index
    %c0_19 = arith.constant 0 : index
    %c0_20 = arith.constant 0 : index
    %54 = vector.load %arg4[%c0_18, %c0_19, %c0_20] : memref<1x1x8xf32, #tpu.memory_space<vmem>>, vector<1x1x8xf32>
    %55 = vector.shape_cast %54 : vector<1x1x8xf32> to vector<1x8xf32>
    %56 = vector.shape_cast %53 : vector<1x8xf32> to vector<1x1x8xf32>
    tpu.vector_store %arg4[%c0_18, %c0_19, %c0_20], %56 {strides = array<i32>} : memref<1x1x8xf32, #tpu.memory_space<vmem>>, vector<1x1x8xf32>,
    return
  }
  func.func @transform_0(%arg0: i32) -> (i32, i32, i32) {
    %c0_i32 = arith.constant 0 : i32
    %c0_i32_0 = arith.constant 0 : i32
    %c0_i32_1 = arith.constant 0 : i32
    return %arg0, %c0_i32, %c0_i32_0 : i32, i32, i32
  }
  func.func @transform_1(%arg0: i32) -> (i32, i32, i32) {
    %c0_i32 = arith.constant 0 : i32
    %c0_i32_0 = arith.constant 0 : i32
    %c0_i32_1 = arith.constant 0 : i32
    return %arg0, %c0_i32, %c0_i32_0 : i32, i32, i32
  }
  func.func @transform_2(%arg0: i32) -> (i32, i32, i32) {
    %c0_i32 = arith.constant 0 : i32
    %c0_i32_0 = arith.constant 0 : i32
    %c0_i32_1 = arith.constant 0 : i32
    return %arg0, %c0_i32, %c0_i32_0 : i32, i32, i32
  }
  func.func @transform_3(%arg0: i32) -> (i32, i32, i32) {
    %c0_i32 = arith.constant 0 : i32
    %c0_i32_0 = arith.constant 0 : i32
    %c0_i32_1 = arith.constant 0 : i32
    return %arg0, %c0_i32, %c0_i32_0 : i32, i32, i32
  }
}

</mosaic_0001>

<llo_original>
// kernel: tpu_custom_call.1
$region0: #{tpu_custom_call.1}
  #allocation0 [shape = 'u32[]', space=smem, size = 0x4, offset = 0x4, fixed_abs, tag = 'smem constant byte address 0x4 - core index']
  #allocation1 [shape = 'u32[144,128]{1,0:T(1,128)}', space=vmem, size = 0x12000, scoped, tag = 'internal scratch']
  %s0 = inlined_call_operand.hbm [shape: f32[2,8,32], index: 0, kind: input, shape index: {}]
  %s1 = inlined_call_operand.hbm [shape: f32[2,8,32], index: 1, kind: input, shape index: {}]
  %s2 = inlined_call_operand.hbm [shape: f32[2,8,8], index: 2, kind: output, shape index: {0}]
  %s3 = inlined_call_operand.hbm [shape: f32[2,1,8], index: 3, kind: output, shape index: {1}]
  %4 = xla_tuple %s2, %s3
  %s5 = sld [smem:[#allocation0]]
  $region57: #{tpu_custom_call.1} parent=0
    _
  %s7 = ssub.s32 1, %s5
  %s8 = scalar_select 0, %s7, %s5
  $region1: #{tpu_custom_call.1} parent=0
    #allocation2 [shape = 'u8[8192]{0}', space=vmem, size = 0x2000, scoped, tag = 'input window, operand 0']
    #allocation3 [shape = 's32[2]{0}', space=sflag, size = 0x8, scoped, tag = 'scoped memory for tpu_custom_call.1']
    #allocation4 [shape = 's32[2]{0}', space=sflag, size = 0x8, scoped, tag = 'scoped memory for tpu_custom_call.1']
    #allocation5 [shape = 'u8[8192]{0}', space=vmem, size = 0x2000, scoped, tag = 'input window, operand 1']
    #allocation6 [shape = 's32[2]{0}', space=sflag, size = 0x8, scoped, tag = 'scoped memory for tpu_custom_call.1']
    #allocation7 [shape = 'u8[8192]{0}', space=vmem, size = 0x2000, scoped, tag = 'output window, operand 0']
    #allocation8 [shape = 'u8[1024]{0}', space=vmem, size = 0x400, scoped, tag = 'output window, operand 1']
    #allocation9 [shape = 's32[2]{0}', space=sflag, size = 0x8, scoped, tag = 'scoped memory for tpu_custom_call.1']
    %9 = vsyncpa [#allocation3], 0
    %s10 = scalar_lea.sflag [#allocation3], 1
    %11 = vsyncpa %s10, 0
    %12 = vsyncpa [#allocation6], 0
    %s13 = scalar_lea.sflag [#allocation6], 1
    %14 = vsyncpa %s13, 0
    %15 = vsyncpa [#allocation4], 0
    %s16 = scalar_lea.sflag [#allocation4], 1
    %17 = vsyncpa %s16, 0
    %18 = vsyncpa [#allocation9], 0
    %s19 = scalar_lea.sflag [#allocation9], 1
    %20 = vsyncpa %s19, 0
    loop: start=0, step=1, limit=4
    $region2: #{tpu_custom_call.1} parent=1 // loop_pre_header
      _
    $region3: #{tpu_custom_call.1} parent=1 // loop_header
      %s22 = sphi 0, %s26
      %p23 = scmp.ge.s32.totalorder %s22, 4
      %s32 = sphi 0, %s34
      %s35 = sphi 0, %s32
      %s36 = sphi 0, %s35
      %s52 = sphi 0, %s36
      %s58 = sphi 0, %s60
      %s61 = sphi 0, %s58
      %s62 = sphi 0, %s61
      %s78 = sphi 0, %s62
      %s84 = sphi 0, %s86
      %s87 = sphi 0, %s84
      %s88 = sphi 0, %s87
      %s104 = sphi 0, %s88
      %s110 = sphi 0, %s112
      %s113 = sphi 0, %s110
      %s114 = sphi 0, %s113
      %s130 = sphi 0, %s114
    $region4: #{tpu_custom_call.1} parent=1 // loop_header_branch
      %25 = sbr.rel (%p23) target = $region8
    $region5: #{tpu_custom_call.1} parent=1 // loop_body
      %s27 = ssub.s32 %s22, 1
      %s28 = ssub.s32 %s22, 2
      %s29 = sadd.s32 %s22, 1
      %s30 = ssub.s32 %s22, %s29
      %p31 = scmp.eq.s32.totalorder %s30, 0
      %s33 = sadd.s32 %s32, 1
      %s34 = scalar_select %p31, %s32, %s33
      %p37 = pneg %p31
      %p38 = scmp.eq.s32.totalorder %s22, 1
      %p39 = por %p37, %p38
      %p40 = scmp.ne.s32.totalorder %s32, %s35
      %p41 = scmp.eq.s32.totalorder %s22, 0
      %p42 = por %p40, %p41
      %p43 = scmp.ne.s32.totalorder %s32, %s35
      %p44 = scmp.eq.s32.totalorder %s27, 1
      %p45 = por %p43, %p44
      %p46 = scmp.ne.s32.totalorder %s35, %s36
      %p47 = scmp.eq.s32.totalorder %s27, 0
      %p48 = por %p46, %p47
      %p49 = scmp.ne.s32.totalorder %s35, %s36
      %p50 = scmp.eq.s32.totalorder %s28, 1
      %p51 = por %p49, %p50
      %p53 = scmp.ne.s32.totalorder %s36, %s52
      %p54 = scmp.eq.s32.totalorder %s28, 0
      %p55 = por %p53, %p54
      %s56 = ssub.s32 %s22, %s29
      %p57 = scmp.eq.s32.totalorder %s56, 0
      %s59 = sadd.s32 %s58, 1
      %s60 = scalar_select %p57, %s58, %s59
      %p63 = pneg %p57
      %p64 = scmp.eq.s32.totalorder %s22, 1
      %p65 = por %p63, %p64
      %p66 = scmp.ne.s32.totalorder %s58, %s61
      %p67 = scmp.eq.s32.totalorder %s22, 0
      %p68 = por %p66, %p67
      %p69 = scmp.ne.s32.totalorder %s58, %s61
      %p70 = scmp.eq.s32.totalorder %s27, 1
      %p71 = por %p69, %p70
      %p72 = scmp.ne.s32.totalorder %s61, %s62
      %p73 = scmp.eq.s32.totalorder %s27, 0
      %p74 = por %p72, %p73
      %p75 = scmp.ne.s32.totalorder %s61, %s62
      %p76 = scmp.eq.s32.totalorder %s28, 1
      %p77 = por %p75, %p76
      %p79 = scmp.ne.s32.totalorder %s62, %s78
      %p80 = scmp.eq.s32.totalorder %s28, 0
      %p81 = por %p79, %p80
      %s82 = ssub.s32 %s22, %s29
      %p83 = scmp.eq.s32.totalorder %s82, 0
      %s85 = sadd.s32 %s84, 1
      %s86 = scalar_select %p83, %s84, %s85
      %p89 = pneg %p83
      %p90 = scmp.eq.s32.totalorder %s22, 1
      %p91 = por %p89, %p90
      %p92 = scmp.ne.s32.totalorder %s84, %s87
      %p93 = scmp.eq.s32.totalorder %s22, 0
      %p94 = por %p92, %p93
      %p95 = scmp.ne.s32.totalorder %s84, %s87
      %p96 = scmp.eq.s32.totalorder %s27, 1
      %p97 = por %p95, %p96
      %p98 = scmp.ne.s32.totalorder %s87, %s88
      %p99 = scmp.eq.s32.totalorder %s27, 0
      %p100 = por %p98, %p99
      %p101 = scmp.ne.s32.totalorder %s87, %s88
      %p102 = scmp.eq.s32.totalorder %s28, 1
      %p103 = por %p101, %p102
      %p105 = scmp.ne.s32.totalorder %s88, %s104
      %p106 = scmp.eq.s32.totalorder %s28, 0
      %p107 = por %p105, %p106
      %s108 = ssub.s32 %s22, %s29
      %p109 = scmp.eq.s32.totalorder %s108, 0
      %s111 = sadd.s32 %s110, 1
      %s112 = scalar_select %p109, %s110, %s111
      %p115 = pneg %p109
      %p116 = scmp.eq.s32.totalorder %s22, 1
      %p117 = por %p115, %p116
      %p118 = scmp.ne.s32.totalorder %s110, %s113
      %p119 = scmp.eq.s32.totalorder %s22, 0
      %p120 = por %p118, %p119
      %p121 = scmp.ne.s32.totalorder %s110, %s113
      %p122 = scmp.eq.s32.totalorder %s27, 1
      %p123 = por %p121, %p122
      %p124 = scmp.ne.s32.totalorder %s113, %s114
      %p125 = scmp.eq.s32.totalorder %s27, 0
      %p126 = por %p124, %p125
      %p127 = scmp.ne.s32.totalorder %s113, %s114
      %p128 = scmp.eq.s32.totalorder %s28, 1
      %p129 = por %p127, %p128
      %p131 = scmp.ne.s32.totalorder %s114, %s130
      %p132 = scmp.eq.s32.totalorder %s28, 0
      %p133 = por %p131, %p132
      %p134 = scmp.le.s32.totalorder 1, %s22
      %p135 = scmp.lt.s32.totalorder %s22, 3
      %p136 = pnand %p134, %p135
      %p137 = pneg %p136
      // Predicated region
      $region9: #{tpu_custom_call.1} parent=5 // pred_check
        _
      $region10: #{tpu_custom_call.1} parent=5 // pred_check_branch
        %139 = sbr.rel (%p136) target = $region12
      $region11: #{tpu_custom_call.1} parent=5 // pred_region
        %s140 = ssub.s32 %s22, 1
      $region12: #{tpu_custom_call.1} parent=5 // pred_fallthru
        _
      %p141 = scmp.lt.s32.totalorder %s22, 2
      // Predicated region
      $region13: #{tpu_custom_call.1} parent=5 // pred_check
        %p142 = pneg %p141
      $region14: #{tpu_custom_call.1} parent=5 // pred_check_branch
        %144 = sbr.rel (%p142) target = $region16
      $region15: #{tpu_custom_call.1} parent=5 // pred_region
        // Predicated region
        $region17: #{tpu_custom_call.1} parent=15 // pred_check
          %p145 = pneg %p42
        $region18: #{tpu_custom_call.1} parent=15 // pred_check_branch
          %147 = sbr.rel (%p145) target = $region20
        $region19: #{tpu_custom_call.1} parent=15 // pred_region
          %s148 = sand.u32 %s32, 1
          %s149 = scalar_lea.sflag [#allocation3], %s148
          %s150 = sand.u32 %s32, 1
          %s151 = smul.addr %s150, 8
          %s152 = scalar_lea.vmem [#allocation2], %s151
          %s154 = ssub.s32 128, 128
          %155 = vsyncadd %s149, %s154
          %s156 = smul.addr %s22, 128
          %s157 = scalar_lea.hbm %s0, %s156
          %s159 = sshll.u32 %s152, 4
          %s160 = int_to_ptr.vmem [resolvable:$true] %s159
          %162 = dma.hbm_to_vmem [thread:$0]  %s157, 128, %s160, %s149
        $region20: #{tpu_custom_call.1} parent=15 // pred_fallthru
          _
        // Predicated region
        $region21: #{tpu_custom_call.1} parent=15 // pred_check
          %p163 = pneg %p68
        $region22: #{tpu_custom_call.1} parent=15 // pred_check_branch
          %165 = sbr.rel (%p163) target = $region24
        $region23: #{tpu_custom_call.1} parent=15 // pred_region
          %s166 = sand.u32 %s58, 1
          %s167 = scalar_lea.sflag [#allocation6], %s166
          %s168 = sand.u32 %s58, 1
          %s169 = smul.addr %s168, 8
          %s170 = scalar_lea.vmem [#allocation5], %s169
          %s172 = ssub.s32 128, 128
          %173 = vsyncadd %s167, %s172
          %s174 = smul.addr %s22, 128
          %s175 = scalar_lea.hbm %s1, %s174
          %s177 = sshll.u32 %s170, 4
          %s178 = int_to_ptr.vmem [resolvable:$true] %s177
          %180 = dma.hbm_to_vmem [thread:$0]  %s175, 128, %s178, %s167
        $region24: #{tpu_custom_call.1} parent=15 // pred_fallthru
          _
      $region16: #{tpu_custom_call.1} parent=5 // pred_fallthru
        _
      %p181 = scmp.le.s32.totalorder 1, %s22
      %p182 = scmp.lt.s32.totalorder %s22, 3
      %p183 = pnand %p181, %p182
      %p184 = pneg %p183
      // Predicated region
      $region25: #{tpu_custom_call.1} parent=5 // pred_check
        _
      $region26: #{tpu_custom_call.1} parent=5 // pred_check_branch
        %186 = sbr.rel (%p183) target = $region28
      $region27: #{tpu_custom_call.1} parent=5 // pred_region
        %s187 = ssub.s32 %s22, 1
        %s188 = sand.u32 %s35, 1
        %s189 = scalar_lea.sflag [#allocation3], %s188
        %s190 = sand.u32 %s35, 1
        %s191 = smul.addr %s190, 8
        %s192 = scalar_lea.vmem [#allocation2], %s191
        // Predicated region
        $region29: #{tpu_custom_call.1} parent=27 // pred_check
          %p193 = pneg %p48
        $region30: #{tpu_custom_call.1} parent=27 // pred_check_branch
          %195 = sbr.rel (%p193) target = $region32
        $region31: #{tpu_custom_call.1} parent=27 // pred_region
          %196 = dma.done %s189, 128
        $region32: #{tpu_custom_call.1} parent=27 // pred_fallthru
          _
        %s197 = sand.u32 %s61, 1
        %s198 = scalar_lea.sflag [#allocation6], %s197
        %s199 = sand.u32 %s61, 1
        %s200 = smul.addr %s199, 8
        %s201 = scalar_lea.vmem [#allocation5], %s200
        // Predicated region
        $region33: #{tpu_custom_call.1} parent=27 // pred_check
          %p202 = pneg %p74
        $region34: #{tpu_custom_call.1} parent=27 // pred_check_branch
          %204 = sbr.rel (%p202) target = $region36
        $region35: #{tpu_custom_call.1} parent=27 // pred_region
          %205 = dma.done %s198, 128
        $region36: #{tpu_custom_call.1} parent=27 // pred_fallthru
          _
        %s206 = sand.u32 %s35, 1
        %s207 = scalar_lea.sflag [#allocation3], %s206
        %s208 = sand.u32 %s35, 1
        %s209 = smul.addr %s208, 8
        %s210 = scalar_lea.vmem [#allocation2], %s209
        %p211 = pneg %p48
        %p212 = pneg %p45
        %s213 = sand.u32 %s61, 1
        %s214 = scalar_lea.sflag [#allocation6], %s213
        %s215 = sand.u32 %s61, 1
        %s216 = smul.addr %s215, 8
        %s217 = scalar_lea.vmem [#allocation5], %s216
        %p218 = pneg %p74
        %p219 = pneg %p71
        %p220 = pneg %p100
        %p221 = pneg %p97
        %s222 = sand.u32 %s87, 1
        %s223 = scalar_lea.sflag [#allocation4], %s222
        %s224 = sand.u32 %s87, 1
        %s225 = smul.addr %s224, 8
        %s226 = scalar_lea.vmem [#allocation7], %s225
        %p227 = pneg %p126
        %p228 = pneg %p123
        %s229 = sand.u32 %s113, 1
        %s230 = scalar_lea.sflag [#allocation9], %s229
        %s231 = sand.u32 %s113, 1
        %s232 = scalar_lea.vmem [#allocation8], %s231
        %v234 = vld [vmem:[%s192] sm:$0xff]
        %v235 = vld [vmem:[%s201] sm:$0xff]
        %v236 = vmul.f32 %v234, %v234
        %vm237 = vcmask 261120
        %v238 = vsel %vm237, %v236, 0.0
        %239 = vadd.xlane.f32.xlu0 %v238
        %v240 = vpop.xlane.xlu0 %239
        %v241 = vmax.f32 %v240, 1e-24
        %v242 = vrsqrt.pop %v241
        %v243 = vmul.f32 %v234, %v242
        %v244 = vmul.f32 %v235, %v235
        %v245 = vsel %vm237, %v244, 0.0
        %246 = vadd.xlane.f32.xlu0 %v245
        %v247 = vpop.xlane.xlu0 %246
        %v248 = vmax.f32 %v247, 1e-24
        %v249 = vrsqrt.pop %v248
        %v250 = vmul.f32 %v235, %v249
        %v251 = vpack.c.bf16 %v243, %v243
        %v252 = vpack.c.bf16 %v250, %v250
        %v254 = vsel %vm237, %v251, 0
        %v257 = vsel %vm237, %v252, 0
        %259 = vmatprep.subr.bf16.mxu0 0
        %260 = vmatpush1.bf16.xpose.msra.mxu0 %v257
        %261 = vmatprep.subr.bf16.mxu0 0
        %262 = vmatpush1.bf16.xpose.msra.mxu0 0
        %263 = vmatprep.subr.bf16.mxu0 0
        %264 = vmatpush1.bf16.xpose.msra.mxu0 0
        %265 = vmatprep.subr.bf16.mxu0 0
        %266 = vmatpush1.bf16.xpose.msra.mxu0 0
        %267 = vmatprep.subr.bf16.mxu0 0
        %268 = vmatpush1.bf16.xpose.msra.mxu0 0
        %269 = vmatprep.subr.bf16.mxu0 0
        %270 = vmatpush1.bf16.xpose.msra.mxu0 0
        %271 = vmatprep.subr.bf16.mxu0 0
        %272 = vmatpush1.bf16.xpose.msra.mxu0 0
        %273 = vmatprep.subr.bf16.mxu0 0
        %274 = vmatpush1.bf16.xpose.msra.mxu0 0
        %275 = vmatprep.subr.bf16.mxu0 0
        %276 = vmatpush1.bf16.xpose.msra.mxu0 0
        %277 = vmatprep.subr.bf16.mxu0 0
        %278 = vmatpush1.bf16.xpose.msra.mxu0 0
        %279 = vmatprep.subr.bf16.mxu0 0
        %280 = vmatpush1.bf16.xpose.msra.mxu0 0
        %281 = vmatprep.subr.bf16.mxu0 0
        %282 = vmatpush1.bf16.xpose.msra.mxu0 0
        %283 = vmatprep.subr.bf16.mxu0 0
        %284 = vmatpush1.bf16.xpose.msra.mxu0 0
        %285 = vmatprep.subr.bf16.mxu0 0
        %286 = vmatpush1.bf16.xpose.msra.mxu0 0
        %287 = vmatprep.subr.bf16.mxu0 0
        %288 = vmatpush1.bf16.xpose.msra.mxu0 0
        %289 = vmatprep.subr.bf16.mxu0 0
        %290 = vmatpush1.bf16.xpose.msra.mxu0 0
        %291 = vmatprep.mubr.bf16.mxu0 0
        %292 = vmatmul.mubr.bf16.gmra.mrb[0].mxu0 %v254
        %v293 = vpop.f32.mrb[0].mxu0
        %v294 = vadd.f32 0.0, %v293
        %v295 = vpop.f32.mrb[0].mxu0
        %v296 = vpop.f32.mrb[0].mxu0
        %v297 = vpop.f32.mrb[0].mxu0
        %298 = vdwg.mxu0
        %vm299 = vcmask 64512
        %300 = vst.msk [vmem:[%s226] sm:$0xff] %vm299, %v294
        %v301 = vsel %vm299, %v294, -inf
        %302 = vmax.xlane.f32.xlu0 %v301
        %v303 = vpop.xlane.xlu0 %302
        %v304 = vsub.f32 %v294, %v303
        %v305 = vmul.f32 %v304, 1.442695
        %v306 = vpow.pop %v305
        %v307 = vsel %vm299, %v306, 0.0
        %308 = vadd.xlane.f32.xlu0 %v307
        %v309 = vpop.xlane.xlu0 %308
        %310 = vmatprep.subr.bf16.mxu0 0
        %311 = vmatpush1.bf16.xpose.msra.mxu0 %v254
        %312 = vmatprep.subr.bf16.mxu0 0
        %313 = vmatpush1.bf16.xpose.msra.mxu0 0
        %314 = vmatprep.subr.bf16.mxu0 0
        %315 = vmatpush1.bf16.xpose.msra.mxu0 0
        %316 = vmatprep.subr.bf16.mxu0 0
        %317 = vmatpush1.bf16.xpose.msra.mxu0 0
        %318 = vmatprep.subr.bf16.mxu0 0
        %319 = vmatpush1.bf16.xpose.msra.mxu0 0
        %320 = vmatprep.subr.bf16.mxu0 0
        %321 = vmatpush1.bf16.xpose.msra.mxu0 0
        %322 = vmatprep.subr.bf16.mxu0 0
        %323 = vmatpush1.bf16.xpose.msra.mxu0 0
        %324 = vmatprep.subr.bf16.mxu0 0
        %325 = vmatpush1.bf16.xpose.msra.mxu0 0
        %326 = vmatprep.subr.bf16.mxu0 0
        %327 = vmatpush1.bf16.xpose.msra.mxu0 0
        %328 = vmatprep.subr.bf16.mxu0 0
        %329 = vmatpush1.bf16.xpose.msra.mxu0 0
        %330 = vmatprep.subr.bf16.mxu0 0
        %331 = vmatpush1.bf16.xpose.msra.mxu0 0
        %332 = vmatprep.subr.bf16.mxu0 0
        %333 = vmatpush1.bf16.xpose.msra.mxu0 0
        %334 = vmatprep.subr.bf16.mxu0 0
        %335 = vmatpush1.bf16.xpose.msra.mxu0 0
        %336 = vmatprep.subr.bf16.mxu0 0
        %337 = vmatpush1.bf16.xpose.msra.mxu0 0
        %338 = vmatprep.subr.bf16.mxu0 0
        %339 = vmatpush1.bf16.xpose.msra.mxu0 0
        %340 = vmatprep.subr.bf16.mxu0 0
        %341 = vmatpush1.bf16.xpose.msra.mxu0 0
        %342 = vmatprep.mubr.bf16.mxu0 0
        %343 = vmatmul.mubr.bf16.gmra.mrb[0].mxu0 %v254
        %v344 = vpop.f32.mrb[0].mxu0
        %v345 = vadd.f32 0.0, %v344
        %v346 = vpop.f32.mrb[0].mxu0
        %v347 = vpop.f32.mrb[0].mxu0
        %v348 = vpop.f32.mrb[0].mxu0
        %349 = vdwg.mxu0
        %v350 = vlaneseq
        %v351 = vshrl.u32 %v350, 7
        %v352 = vlaneseq
        %v353 = vand.u32 %v352, 127
        %vm354 = vcmp.eq.s32.totalorder %v351, %v353
        %v355 = vsel %vm354, -1e+30, %v345
        %v356 = vsel %vm299, %v355, -inf
        %357 = vmax.xlane.f32.xlu0 %v356
        %v358 = vpop.xlane.xlu0 %357
        %v359 = vmax.f32 %v303, %v358
        %v360 = vsub.f32 %v303, %v359
        %v361 = vmul.f32 %v360, 1.442695
        %v362 = vpow.pop %v361
        %v363 = vmul.f32 %v309, %v362
        %v364 = vsub.f32 %v355, %v359
        %v365 = vmul.f32 %v364, 1.442695
        %v366 = vpow.pop %v365
        %v367 = vsel %vm299, %v366, 0.0
        %368 = vadd.xlane.f32.xlu0 %v367
        %v369 = vpop.xlane.xlu0 %368
        %v370 = vadd.f32 %v363, %v369
        %v371 = vlog2.pop %v370
        %v372 = vmul.f32 %v371, 0.6931472
        %v373 = vadd.f32 %v359, %v372
        %v375 = vlaneseq
        %v376 = vshrl.u32 %v375, 7
        %v377 = vsub.s32 %v353, %v376
        %v378 = vrot.slane %v373, %v377
        %vm380 = vcmask 57344
        %381 = vst.msk [vmem:[%s232] sm:$0x1] %vm380, %v378
        %s382 = sand.u32 %s87, 1
        %s383 = scalar_lea.sflag [#allocation4], %s382
        %s384 = sand.u32 %s87, 1
        %s385 = smul.addr %s384, 8
        %s386 = scalar_lea.vmem [#allocation7], %s385
        %s387 = sand.u32 %s113, 1
        %s388 = scalar_lea.sflag [#allocation9], %s387
        %s389 = sand.u32 %s113, 1
        %s390 = scalar_lea.vmem [#allocation8], %s389
        // Predicated region
        $region37: #{tpu_custom_call.1} parent=27 // pred_check
          %p391 = pneg %p97
        $region38: #{tpu_custom_call.1} parent=27 // pred_check_branch
          %393 = sbr.rel (%p391) target = $region40
        $region39: #{tpu_custom_call.1} parent=27 // pred_region
          %s395 = ssub.s32 128, 128
          %396 = vsyncadd %s383, %s395
          %s397 = smul.addr %s27, 128
          %s398 = scalar_lea.hbm %s2, %s397
          %s400 = sshll.u32 %s386, 4
          %s401 = int_to_ptr.vmem [resolvable:$true] %s400
          %403 = dma.vmem_to_hbm [thread:$0]  %s401, 128, %s398, %s383
        $region40: #{tpu_custom_call.1} parent=27 // pred_fallthru
          _
        // Predicated region
        $region41: #{tpu_custom_call.1} parent=27 // pred_check
          %p404 = pneg %p123
        $region42: #{tpu_custom_call.1} parent=27 // pred_check_branch
          %406 = sbr.rel (%p404) target = $region44
        $region43: #{tpu_custom_call.1} parent=27 // pred_region
          %s408 = ssub.s32 16, 16
          %409 = vsyncadd %s388, %s408
          %s410 = smul.addr %s27, 16
          %s411 = scalar_lea.hbm %s3, %s410
          %s413 = sshll.u32 %s390, 4
          %s414 = int_to_ptr.vmem [resolvable:$true] %s413
          %416 = dma.vmem_to_hbm [thread:$0]  %s414, 16, %s411, %s388
        $region44: #{tpu_custom_call.1} parent=27 // pred_fallthru
          _
      $region28: #{tpu_custom_call.1} parent=5 // pred_fallthru
        _
      %p417 = scmp.le.s32.totalorder 2, %s22
      // Predicated region
      $region45: #{tpu_custom_call.1} parent=5 // pred_check
        %p418 = pneg %p417
      $region46: #{tpu_custom_call.1} parent=5 // pred_check_branch
        %420 = sbr.rel (%p418) target = $region48
      $region47: #{tpu_custom_call.1} parent=5 // pred_region
        %s421 = ssub.s32 %s22, 2
        // Predicated region
        $region49: #{tpu_custom_call.1} parent=47 // pred_check
          %p422 = pneg %p103
        $region50: #{tpu_custom_call.1} parent=47 // pred_check_branch
          %424 = sbr.rel (%p422) target = $region52
        $region51: #{tpu_custom_call.1} parent=47 // pred_region
          %s425 = sand.u32 %s88, 1
          %s426 = scalar_lea.sflag [#allocation4], %s425
          %s427 = sand.u32 %s88, 1
          %s428 = smul.addr %s427, 8
          %s429 = scalar_lea.vmem [#allocation7], %s428
          %430 = dma.done %s426, 128
        $region52: #{tpu_custom_call.1} parent=47 // pred_fallthru
          _
        // Predicated region
        $region53: #{tpu_custom_call.1} parent=47 // pred_check
          %p431 = pneg %p129
        $region54: #{tpu_custom_call.1} parent=47 // pred_check_branch
          %433 = sbr.rel (%p431) target = $region56
        $region55: #{tpu_custom_call.1} parent=47 // pred_region
          %s434 = sand.u32 %s114, 1
          %s435 = scalar_lea.sflag [#allocation9], %s434
          %s436 = sand.u32 %s114, 1
          %s437 = scalar_lea.vmem [#allocation8], %s436
          %438 = dma.done %s435, 16
        $region56: #{tpu_custom_call.1} parent=47 // pred_fallthru
          _
      $region48: #{tpu_custom_call.1} parent=5 // pred_fallthru
        _
    $region6: #{tpu_custom_call.1} parent=1 // loop_footer
      %s26 = sadd.s32 1, %s22
    $region7: #{tpu_custom_call.1} parent=1 // loop_footer_branch
      %21 = sbr.rel target = $region3
    $region8: #{tpu_custom_call.1} parent=1 // loop_exit
      _
    %439 = vsyncpa [#allocation3], 1
    %s440 = scalar_lea.sflag [#allocation3], 1
    %441 = vsyncpa %s440, 1
    %442 = vsyncpa [#allocation6], 1
    %s443 = scalar_lea.sflag [#allocation6], 1
    %444 = vsyncpa %s443, 1
    %445 = vsyncpa [#allocation4], 1
    %s446 = scalar_lea.sflag [#allocation4], 1
    %447 = vsyncpa %s446, 1
    %448 = vsyncpa [#allocation9], 1
    %s449 = scalar_lea.sflag [#allocation9], 1
    %450 = vsyncpa %s449, 1

</llo_original>
